<compile_context>
chip_gen: v6e
topology: v6e:2x2x1
jax: 0.10.0
libtpu: 0.0.40
codegen_flags: <defaults>
</compile_context>

<pallas_src>
import functools

import jax
import jax.numpy as jnp
from jax.experimental import pallas as pl
from jax.experimental.pallas import tpu as pltpu

# Above every generation's default scoped limit, well under v7x's 64 MiB physical VMEM.
_VMEM_LIMIT_BYTES = 48 * 1024 * 1024


def _round_up(x, m):
    return (x + m - 1) // m * m


def _pad2(a, rows, cols):
    pr, pc = rows - a.shape[0], cols - a.shape[1]
    if pr == 0 and pc == 0:
        return a
    return jnp.pad(a, ((0, pr), (0, pc)))


# ----------------------------- Kernels -------------------------------------

def _matmul_bias_kernel(x_ref, w_ref, b_ref, o_ref, acc_ref):
    """o = x @ w + b over an (M, Nout, K) grid; bias applied once in the K epilogue."""
    k = pl.program_id(2)

    @pl.when(k == 0)
    def _():
        acc_ref[...] = jnp.zeros_like(acc_ref)

    acc_ref[...] += jnp.dot(x_ref[...], w_ref[...],
                            preferred_element_type=jnp.float32)

    @pl.when(k == pl.num_programs(2) - 1)
    def _():
        o_ref[...] = (acc_ref[...] + b_ref[...]).astype(o_ref.dtype)


def _matmul_kernel(x_ref, w_ref, o_ref, acc_ref):
    """o = x @ w over an (M, Nout, K) grid (no bias)."""
    k = pl.program_id(2)

    @pl.when(k == 0)
    def _():
        acc_ref[...] = jnp.zeros_like(acc_ref)

    acc_ref[...] += jnp.dot(x_ref[...], w_ref[...],
                            preferred_element_type=jnp.float32)

    @pl.when(k == pl.num_programs(2) - 1)
    def _():
        o_ref[...] = acc_ref[...].astype(o_ref.dtype)


def _matmul_stats_kernel(x_ref, w_ref, y_ref, psum_ref, psq_ref, acc_ref):
    """BN pass 1: y = x @ w plus PER-M-TILE partial column sum / sum-of-squares.

    Grid is (M, Nout, K) so x is streamed from HBM only once; the tiny cross-M-tile
    stats reduction happens in the wrapper (jnp.sum over m_tiles).
    """
    k = pl.program_id(2)

    @pl.when(k == 0)
    def _():
        acc_ref[...] = jnp.zeros_like(acc_ref)

    acc_ref[...] += jnp.dot(x_ref[...], w_ref[...],
                            preferred_element_type=jnp.float32)

    @pl.when(k == pl.num_programs(2) - 1)
    def _():
        y = acc_ref[...]
        y_ref[...] = y.astype(y_ref.dtype)
        psum_ref[...] = jnp.sum(y, axis=0, keepdims=True)[None]        # (1,1,tn)
        psq_ref[...] = jnp.sum(y * y, axis=0, keepdims=True)[None]     # (1,1,tn)


def _bn_normalize_kernel(y_ref, sum_ref, sq_ref, g_ref, b_ref, o_ref, *,
                         n_rows, eps):
    """BN pass 2: normalize with batch statistics (sum/sumsq form), scale and shift."""
    # TODO(synk): E[y^2]-E[y]^2 can cancel catastrophically when |mean| >> std;
    #             a centered two-pass variance would be more robust.
    y = y_ref[...].astype(jnp.float32)
    inv_n = 1.0 / n_rows
    mean = sum_ref[...] * inv_n
    var = jnp.maximum(sq_ref[...] * inv_n - mean * mean, 0.0)
    inv_std = jax.lax.rsqrt(var + eps)
    o_ref[...] = ((y - mean) * (inv_std * g_ref[...]) + b_ref[...]).astype(o_ref.dtype)


# ----------------------------- Wrapper --------------------------------------

def _pick_tiles(m, out_f, in_f, tm_max, tn_max, tk_max, compute_dtype):
    sub = 8 if jnp.dtype(compute_dtype).itemsize >= 4 else 16   # sublane tile for dtype
    n128 = _round_up(out_f, 128)
    k128 = _round_up(in_f, 128)
    tm = _round_up(min(tm_max, _round_up(m, 128)), sub)
    tn = _round_up(min(tn_max, n128), 128)
    tk = _round_up(min(tk_max, k128), 128)
    # v7x has 2 TensorCores: if every "parallel" axis would have a single tile,
    # split N so both cores get work (skinny-M case). No effect on v5e/v6e (1 TC).
    if pl.cdiv(m, tm) == 1 and pl.cdiv(n128, tn) == 1 and n128 >= 256:
        tn = max(128, (n128 // 2) // 128 * 128)
    return tm, tn, tk


def linear_layer_forward(x, weight=None, bias=None, gamma=None, beta=None,
                         use_bias=True, use_bn=False, eps=1e-5,
                         weight_t=None, compute_dtype=jnp.bfloat16,
                         tm_max=512, tn_max=512, tk_max=512):
    """Pallas TPU LinearLayer.forward.

    x:        (N, in_features)
    weight:   (out_features, in_features)  (PyTorch nn.Linear convention), or
    weight_t: (in_features, out_features)  pre-transposed persistent parameter
              (hoists the transpose out of the per-call path).
    bias:     (out_features,)   used only if use_bias and not use_bn
    gamma/beta: (out_features,) used only if use_bn (training-mode batch stats)
    compute_dtype: MXU operand dtype (bf16 default; f32 accumulation always).
    """
    m, in_f = x.shape
    w_t = weight_t if weight_t is not None else weight.T          # (in_f, out_f)
    out_f = w_t.shape[1]
    out_dtype = x.dtype

    tm, tn, tk = _pick_tiles(m, out_f, in_f, tm_max, tn_max, tk_max, compute_dtype)
    m_p = _round_up(m, tm)
    n_p = _round_up(out_f, tn)
    k_p = _round_up(in_f, tk)

    # Layout plumbing: pad to lane-dense 128-multiples ONLY when needed and cast the
    # MXU operands to the compute dtype. Zero-padding keeps matmul and BN stats exact.
    x_p = _pad2(x, m_p, k_p).astype(compute_dtype)
    w_p = _pad2(w_t, k_p, n_p).astype(compute_dtype)

    cbytes = jnp.dtype(compute_dtype).itemsize
    cost = pl.CostEstimate(
        flops=2 * m_p * n_p * k_p,
        transcendentals=0,
        bytes_accessed=cbytes * (m_p * k_p * (n_p // tn) + k_p * n_p * (m_p // tm))
        + 4 * m_p * n_p)

    x_spec = pl.BlockSpec((tm, tk), lambda i, j, k: (i, k))
    w_spec = pl.BlockSpec((tk, tn), lambda i, j, k: (k, j))
    o_spec = pl.BlockSpec((tm, tn), lambda i, j, k: (i, j))
    col_spec = pl.BlockSpec((1, tn), lambda i, j, k: (0, j))
    grid_mnk = (m_p // tm, n_p // tn, k_p // tk)
    mm_params = pltpu.CompilerParams(
        dimension_semantics=("parallel", "parallel", "arbitrary"),
        vmem_limit_bytes=_VMEM_LIMIT_BYTES)

    if not use_bn:
        if use_bias:
            b_p = _pad2(bias.reshape(1, -1).astype(jnp.float32), 1, n_p)
            y_p = pl.pallas_call(
                _matmul_bias_kernel,
                out_shape=jax.ShapeDtypeStruct((m_p, n_p), out_dtype),
                grid_spec=pltpu.PrefetchScalarGridSpec(
                    num_scalar_prefetch=0,
                    grid=grid_mnk,
                    in_specs=[x_spec, w_spec, col_spec],
                    out_specs=o_spec,
                    scratch_shapes=[pltpu.VMEM((tm, tn), jnp.float32)]),
                compiler_params=mm_params,
                cost_estimate=cost,
            )(x_p, w_p, b_p)
        else:
            y_p = pl.pallas_call(
                _matmul_kernel,
                out_shape=jax.ShapeDtypeStruct((m_p, n_p), out_dtype),
                grid_spec=pltpu.PrefetchScalarGridSpec(
                    num_scalar_prefetch=0,
                    grid=grid_mnk,
                    in_specs=[x_spec, w_spec],
                    out_specs=o_spec,
                    scratch_shapes=[pltpu.VMEM((tm, tn), jnp.float32)]),
                compiler_params=mm_params,
                cost_estimate=cost,
            )(x_p, w_p)
        if m_p == m and n_p == out_f:
            return y_p
        return y_p[:m, :out_f]

    # ---- use_bn path: linear (no bias) + BatchNorm1d (training-mode batch stats) ----
    # TODO(synk): eval-mode BN (running_mean/running_var) and the running-stats update
    #             buffer side effect are not implemented; the (redundant) linear bias
    #             is dropped, which only matches training-mode BN semantics.
    m_tiles = m_p // tm

    # Pass 1: matmul + per-M-tile partial column stats.  y kept in the compute dtype
    # (bf16 by default) to halve the HBM traffic of the memory-bound pass 2.
    # Zero-padded rows of x contribute exactly 0 to sum/sumsq; divide by the true m.
    y_p, psum, psq = pl.pallas_call(
        _matmul_stats_kernel,
        out_shape=(jax.ShapeDtypeStruct((m_p, n_p), compute_dtype),
                   jax.ShapeDtypeStruct((m_tiles, 1, n_p), jnp.float32),
                   jax.ShapeDtypeStruct((m_tiles, 1, n_p), jnp.float32)),
        grid_spec=pltpu.PrefetchScalarGridSpec(
            num_scalar_prefetch=0,
            grid=grid_mnk,
            in_specs=[x_spec, w_spec],
            out_specs=(o_spec,
                       pl.BlockSpec((1, 1, tn), lambda i, j, k: (i, 0, j)),
                       pl.BlockSpec((1, 1, tn), lambda i, j, k: (i, 0, j))),
            scratch_shapes=[pltpu.VMEM((tm, tn), jnp.float32)]),
        compiler_params=mm_params,
        cost_estimate=cost,
    )(x_p, w_p)

    # Tiny cross-M-tile reduction of the partial stats (m_tiles x n_p floats).
    col_sum = jnp.sum(psum, axis=0)   # (1, n_p)
    col_sq = jnp.sum(psq, axis=0)     # (1, n_p)

    g_p = _pad2(gamma.reshape(1, -1).astype(jnp.float32), 1, n_p)
    be_p = _pad2(beta.reshape(1, -1).astype(jnp.float32), 1, n_p)

    # Pass 2 is memory-bound: use large / full-row-panel tiles (capped by a VMEM budget).
    budget = 24 * 1024 * 1024
    tn2 = n_p if tm * n_p * 12 <= budget else tn
    tm2 = m_p if m_p * tn2 * 12 <= budget else tm

    out_p = pl.pallas_call(
        functools.partial(_bn_normalize_kernel, n_rows=float(m), eps=eps),
        out_shape=jax.ShapeDtypeStruct((m_p, n_p), out_dtype),
        grid_spec=pltpu.PrefetchScalarGridSpec(
            num_scalar_prefetch=0,
            grid=(m_p // tm2, n_p // tn2),
            in_specs=[pl.BlockSpec((tm2, tn2), lambda i, j: (i, j)),
                      pl.BlockSpec((1, tn2), lambda i, j: (0, j)),
                      pl.BlockSpec((1, tn2), lambda i, j: (0, j)),
                      pl.BlockSpec((1, tn2), lambda i, j: (0, j)),
                      pl.BlockSpec((1, tn2), lambda i, j: (0, j))],
            out_specs=pl.BlockSpec((tm2, tn2), lambda i, j: (i, j))),
        compiler_params=pltpu.CompilerParams(
            dimension_semantics=("parallel", "parallel"),
            vmem_limit_bytes=_VMEM_LIMIT_BYTES),
    )(y_p, col_sum, col_sq, g_p, be_p)

    if m_p == m and n_p == out_f:
        return out_p
    return out_p[:m, :out_f]


# ----------------------------- Driver --------------------------------------

if __name__ == "__main__":
    key = jax.random.PRNGKey(0)
    N, IN_F, OUT_F = 8, 32, 64

    k_x, k_w, k_b = jax.random.split(key, 3)
    x = jax.random.normal(k_x, (N, IN_F), dtype=jnp.float32)
    bound = 1.0 / (IN_F ** 0.5)
    weight = jax.random.uniform(k_w, (OUT_F, IN_F), minval=-bound, maxval=bound,
                                dtype=jnp.float32)
    bias = jax.random.uniform(k_b, (OUT_F,), minval=-bound, maxval=bound,
                              dtype=jnp.float32)
    gamma = jnp.ones((OUT_F,), dtype=jnp.float32)
    beta = jnp.zeros((OUT_F,), dtype=jnp.float32)

    # bf16-quantized-input reference for the default bf16 MXU path.
    xq = x.astype(jnp.bfloat16).astype(jnp.float32)
    wq = weight.astype(jnp.bfloat16).astype(jnp.float32)

    # Default config (bf16 operands): y = x @ W^T + b
    y = linear_layer_forward(x, weight, bias=bias, use_bias=True, use_bn=False)
    jax.block_until_ready(y)
    assert jnp.allclose(y, xq @ wq.T + bias, atol=1e-2, rtol=1e-2)

    # f32 compute path (strict check) + pre-transposed persistent weight.
    y32 = linear_layer_forward(x, weight_t=weight.T, bias=bias, use_bias=True,
                               use_bn=False, compute_dtype=jnp.float32)
    jax.block_until_ready(y32)
    assert jnp.allclose(y32, x @ weight.T + bias, atol=1e-5, rtol=1e-5)

    # use_bias=False, f32 compute.
    y_nb = linear_layer_forward(x, weight, use_bias=False, use_bn=False,
                                compute_dtype=jnp.float32)
    jax.block_until_ready(y_nb)
    assert jnp.allclose(y_nb, x @ weight.T, atol=1e-5, rtol=1e-5)

    # use_bn=True (linear w/o bias + BatchNorm1d, training-mode batch stats), bf16.
    y_bn = linear_layer_forward(x, weight, gamma=gamma, beta=beta,
                                use_bias=True, use_bn=True)
    jax.block_until_ready(y_bn)
    zq = xq @ wq.T
    mu = zq.mean(axis=0, keepdims=True)
    var = ((zq - mu) ** 2).mean(axis=0, keepdims=True)
    y_bn_ref = (zq - mu) / jnp.sqrt(var + 1e-5) * gamma + beta
    assert jnp.allclose(y_bn, y_bn_ref, atol=5e-2, rtol=5e-2)

    # Multi-tile path: tiny tiles force a real (M, Nout, K) grid with K accumulation
    # and cross-M-tile BN statistics; f32 compute for strict comparison.
    N2, IN2, OUT2 = 24, 384, 256
    k2x, k2w, k2b = jax.random.split(jax.random.PRNGKey(1), 3)
    x2 = jax.random.normal(k2x, (N2, IN2), dtype=jnp.float32)
    w2 = jax.random.normal(k2w, (OUT2, IN2), dtype=jnp.float32) * 0.05
    b2 = jax.random.normal(k2b, (OUT2,), dtype=jnp.float32)
    g2 = jnp.linspace(0.5, 1.5, OUT2, dtype=jnp.float32)
    be2 = jnp.linspace(-1.0, 1.0, OUT2, dtype=jnp.float32)

    y2 = linear_layer_forward(x2, w2, bias=b2, use_bias=True, use_bn=False,
                              compute_dtype=jnp.float32,
                              tm_max=8, tn_max=128, tk_max=128)
    jax.block_until_ready(y2)
    assert jnp.allclose(y2, x2 @ w2.T + b2, atol=1e-4, rtol=1e-4)

    y2_bn = linear_layer_forward(x2, w2, gamma=g2, beta=be2, use_bias=True,
                                 use_bn=True, compute_dtype=jnp.float32,
                                 tm_max=8, tn_max=128, tk_max=128)
    jax.block_until_ready(y2_bn)
    z2 = x2 @ w2.T
    mu2 = z2.mean(axis=0, keepdims=True)
    var2 = ((z2 - mu2) ** 2).mean(axis=0, keepdims=True)
    y2_bn_ref = (z2 - mu2) / jnp.sqrt(var2 + 1e-5) * g2 + be2
    assert jnp.allclose(y2_bn, y2_bn_ref, atol=1e-3, rtol=1e-3)

    print("KERNEL_OK")
</pallas_src>

<mosaic_0001>
module attributes {stable_mosaic.version = 11 : i64} {
  func.func @_matmul_bias_kernel(%arg0: i32, %arg1: i32, %arg2: i32, %arg3: memref<128x128xbf16, #tpu.memory_space<vmem>>, %arg4: memref<128x128xbf16, #tpu.memory_space<vmem>>, %arg5: memref<1x128xf32, #tpu.memory_space<vmem>>, %arg6: memref<128x128xf32, #tpu.memory_space<vmem>>, %arg7: memref<128x128xf32, #tpu.memory_space<vmem>>) attributes {dimension_semantics = [#tpu.dimension_semantics<parallel>, #tpu.dimension_semantics<parallel>, #tpu.dimension_semantics<arbitrary>], iteration_bounds = array<i64: 1, 1, 1>, scalar_prefetch = 0 : i64, scratch_operands = 1 : i64, tpu.core_type = #tpu.core_type<tc>, window_params = [{transform_indices = @transform_0, window_bounds = array<i64: 128, 128>}, {transform_indices = @transform_1, window_bounds = array<i64: 128, 128>}, {transform_indices = @transform_2, window_bounds = array<i64: 1, 128>}, {transform_indices = @transform_3, window_bounds = array<i64: 128, 128>}]} {
    %c0_i32 = arith.constant 0 : i32
    %0 = arith.cmpi eq, %arg2, %c0_i32 : i32
    %1 = arith.extui %0 : i1 to i32
    %c0_i32_0 = arith.constant 0 : i32
    %2 = arith.cmpi ne, %1, %c0_i32_0 : i32
    scf.if %2 {
      %cst_10 = arith.constant 0.000000e+00 : f32
      %12 = vector.broadcast %cst_10 : f32 to vector<128x128xf32>
      %c0_11 = arith.constant 0 : index
      %c0_12 = arith.constant 0 : index
      %13 = vector.load %arg7[%c0_11, %c0_12] : memref<128x128xf32, #tpu.memory_space<vmem>>, vector<128x128xf32>
      tpu.vector_store %arg7[%c0_11, %c0_12], %12 {strides = array<i32>} : memref<128x128xf32, #tpu.memory_space<vmem>>, vector<128x128xf32>,
    } else {
    }
    %c0 = arith.constant 0 : index
    %c0_1 = arith.constant 0 : index
    %3 = vector.load %arg7[%c0, %c0_1] : memref<128x128xf32, #tpu.memory_space<vmem>>, vector<128x128xf32>
    %c0_2 = arith.constant 0 : index
    %c0_3 = arith.constant 0 : index
    %4 = vector.load %arg3[%c0_2, %c0_3] : memref<128x128xbf16, #tpu.memory_space<vmem>>, vector<128x128xbf16>
    %c0_4 = arith.constant 0 : index
    %c0_5 = arith.constant 0 : index
    %5 = vector.load %arg4[%c0_4, %c0_5] : memref<128x128xbf16, #tpu.memory_space<vmem>>, vector<128x128xbf16>
    %cst = arith.constant dense<0.000000e+00> : vector<128x128xf32>
    %6 = tpu.matmul %4, %5, %cst {dimension_numbers = #tpu.dot_dimension_numbers<[1], [0], [0], [1], [0, 0, 1, 1], [], []>} : vector<128x128xbf16>, vector<128x128xbf16>, vector<128x128xf32> -> vector<128x128xf32>
    %7 = arith.addf %3, %6 : vector<128x128xf32>
    %c0_6 = arith.constant 0 : index
    %c0_7 = arith.constant 0 : index
    %8 = vector.load %arg7[%c0_6, %c0_7] : memref<128x128xf32, #tpu.memory_space<vmem>>, vector<128x128xf32>
    tpu.vector_store %arg7[%c0_6, %c0_7], %7 {strides = array<i32>} : memref<128x128xf32, #tpu.memory_space<vmem>>, vector<128x128xf32>,
    %c0_i32_8 = arith.constant 0 : i32
    %9 = arith.cmpi eq, %arg2, %c0_i32_8 : i32
    %10 = arith.extui %9 : i1 to i32
    %c0_i32_9 = arith.constant 0 : i32
    %11 = arith.cmpi ne, %10, %c0_i32_9 : i32
    scf.if %11 {
      %c0_10 = arith.constant 0 : index
      %c0_11 = arith.constant 0 : index
      %12 = vector.load %arg7[%c0_10, %c0_11] : memref<128x128xf32, #tpu.memory_space<vmem>>, vector<128x128xf32>
      %c0_12 = arith.constant 0 : index
      %c0_13 = arith.constant 0 : index
      %13 = vector.load %arg5[%c0_12, %c0_13] : memref<1x128xf32, #tpu.memory_space<vmem>>, vector<1x128xf32>
      %14 = vector.broadcast %13 : vector<1x128xf32> to vector<128x128xf32>
      %15 = arith.addf %12, %14 : vector<128x128xf32>
      %c0_14 = arith.constant 0 : index
      %c0_15 = arith.constant 0 : index
      %16 = vector.load %arg6[%c0_14, %c0_15] : memref<128x128xf32, #tpu.memory_space<vmem>>, vector<128x128xf32>
      tpu.vector_store %arg6[%c0_14, %c0_15], %15 {strides = array<i32>} : memref<128x128xf32, #tpu.memory_space<vmem>>, vector<128x128xf32>,
    } else {
    }
    return
  }
  func.func @transform_0(%arg0: i32, %arg1: i32, %arg2: i32) -> (i32, i32) {
    %c0_i32 = arith.constant 0 : i32
    return %arg0, %arg2 : i32, i32
  }
  func.func @transform_1(%arg0: i32, %arg1: i32, %arg2: i32) -> (i32, i32) {
    %c0_i32 = arith.constant 0 : i32
    return %arg2, %arg1 : i32, i32
  }
  func.func @transform_2(%arg0: i32, %arg1: i32, %arg2: i32) -> (i32, i32) {
    %c0_i32 = arith.constant 0 : i32
    %c0_i32_0 = arith.constant 0 : i32
    return %c0_i32, %arg1 : i32, i32
  }
  func.func @transform_3(%arg0: i32, %arg1: i32, %arg2: i32) -> (i32, i32) {
    %c0_i32 = arith.constant 0 : i32
    return %arg0, %arg1 : i32, i32
  }
}

</mosaic_0001>

<llo_original>
// kernel: tpu_custom_call.1
$region0: #{tpu_custom_call.1}
  #allocation0 [shape = 'u32[]', space=smem, size = 0x4, offset = 0x4, fixed_abs, tag = 'smem constant byte address 0x4 - core index']
  #allocation1 [shape = 'u32[144,128]{1,0:T(1,128)}', space=vmem, size = 0x12000, scoped, tag = 'internal scratch']
  #allocation2 [shape = 'f32[128,128]{1,0:T(8,128)}', space=vmem, size = 0x10000, scoped, tag = 'scratch operand']
  %s0 = inlined_call_operand.hbm [shape: bf16[128,128], index: 0, kind: input, shape index: {}]
  %s1 = inlined_call_operand.hbm [shape: bf16[128,128], index: 1, kind: input, shape index: {}]
  %s2 = inlined_call_operand.vmem [shape: f32[1,128], index: 2, kind: input, shape index: {}]
  %s3 = inlined_call_operand.hbm [shape: f32[128,128], index: 3, kind: output, shape index: {}]
  %s4 = sld [smem:[#allocation0]]
  $region38: #{tpu_custom_call.1} parent=0
    _
  %s6 = ssub.s32 1, %s4
  %s7 = scalar_select 0, %s6, %s4
  $region1: #{tpu_custom_call.1} parent=0
    #allocation3 [shape = 'u8[32768]{0}', space=vmem, size = 0x8000, scoped, tag = 'input window, operand 0, single buffered']
    #allocation4 [shape = 's32[1]{0}', space=sflag, size = 0x4, scoped, tag = 'scoped memory for tpu_custom_call.1']
    #allocation5 [shape = 's32[1]{0}', space=sflag, size = 0x4, scoped, tag = 'scoped memory for tpu_custom_call.1']
    #allocation6 [shape = 'u8[32768]{0}', space=vmem, size = 0x8000, scoped, tag = 'input window, operand 1, single buffered']
    #allocation7 [shape = 's32[1]{0}', space=sflag, size = 0x4, scoped, tag = 'scoped memory for tpu_custom_call.1']
    #allocation8 [shape = 'u8[65536]{0}', space=vmem, size = 0x10000, scoped, tag = 'output window, operand 0, single buffered']
    %8 = vsyncpa [#allocation4], 0
    %9 = vsyncpa [#allocation7], 0
    %10 = vsyncpa [#allocation5], 0
    // Predicated region
    $region2: #{tpu_custom_call.1} parent=1 // pred_check
      _
    $region3: #{tpu_custom_call.1} parent=1 // pred_check_branch
      %12 = sbr.rel (0) target = $region5
    $region4: #{tpu_custom_call.1} parent=1 // pred_region
      %s14 = ssub.s32 1024, 1024
      %15 = vsyncadd [#allocation4], %s14
      %s16 = sshll.u32 [#allocation3], 4
      %s17 = int_to_ptr.vmem [resolvable:$true] %s16
      %22 = dma.hbm_to_vmem [thread:$0]  %s0, 1024, %s17, [#allocation4], 64, 64, 4
    $region5: #{tpu_custom_call.1} parent=1 // pred_fallthru
      _
    // Predicated region
    $region6: #{tpu_custom_call.1} parent=1 // pred_check
      _
    $region7: #{tpu_custom_call.1} parent=1 // pred_check_branch
      %24 = sbr.rel (0) target = $region9
    $region8: #{tpu_custom_call.1} parent=1 // pred_region
      %s26 = ssub.s32 1024, 1024
      %27 = vsyncadd [#allocation7], %s26
      %s28 = sshll.u32 [#allocation6], 4
      %s29 = int_to_ptr.vmem [resolvable:$true] %s28
      %34 = dma.hbm_to_vmem [thread:$0]  %s1, 1024, %s29, [#allocation7], 64, 64, 4
    $region9: #{tpu_custom_call.1} parent=1 // pred_fallthru
      _
    // Predicated region
    $region10: #{tpu_custom_call.1} parent=1 // pred_check
      _
    $region11: #{tpu_custom_call.1} parent=1 // pred_check_branch
      %36 = sbr.rel (0) target = $region13
    $region12: #{tpu_custom_call.1} parent=1 // pred_region
      _
    $region13: #{tpu_custom_call.1} parent=1 // pred_fallthru
      _
    // Predicated region
    $region14: #{tpu_custom_call.1} parent=1 // pred_check
      _
    $region15: #{tpu_custom_call.1} parent=1 // pred_check_branch
      %38 = sbr.rel (0) target = $region17
    $region16: #{tpu_custom_call.1} parent=1 // pred_region
      %39 = dma.done [#allocation4], 1024
    $region17: #{tpu_custom_call.1} parent=1 // pred_fallthru
      _
    // Predicated region
    $region18: #{tpu_custom_call.1} parent=1 // pred_check
      _
    $region19: #{tpu_custom_call.1} parent=1 // pred_check_branch
      %41 = sbr.rel (0) target = $region21
    $region20: #{tpu_custom_call.1} parent=1 // pred_region
      %42 = dma.done [#allocation7], 1024
    $region21: #{tpu_custom_call.1} parent=1 // pred_fallthru
      _
    %p44 = scmp.eq.s32.totalorder 0, 0
    // Predicated region
    $region22: #{tpu_custom_call.1} parent=1 // pred_check
      %p45 = pneg %p44
    $region23: #{tpu_custom_call.1} parent=1 // pred_check_branch
      %47 = sbr.rel (%p45) target = $region25
    $region24: #{tpu_custom_call.1} parent=1 // pred_region
      %48 = vst [vmem:[#allocation2] sm:$0xff] 0.0
      %49 = vst [vmem:[#allocation2 + $0x8] sm:$0xff] 0.0
      %50 = vst [vmem:[#allocation2 + $0x10] sm:$0xff] 0.0
      %51 = vst [vmem:[#allocation2 + $0x18] sm:$0xff] 0.0
      %52 = vst [vmem:[#allocation2 + $0x20] sm:$0xff] 0.0
      %53 = vst [vmem:[#allocation2 + $0x28] sm:$0xff] 0.0
      %54 = vst [vmem:[#allocation2 + $0x30] sm:$0xff] 0.0
      %55 = vst [vmem:[#allocation2 + $0x38] sm:$0xff] 0.0
      %56 = vst [vmem:[#allocation2 + $0x40] sm:$0xff] 0.0
      %57 = vst [vmem:[#allocation2 + $0x48] sm:$0xff] 0.0
      %58 = vst [vmem:[#allocation2 + $0x50] sm:$0xff] 0.0
      %59 = vst [vmem:[#allocation2 + $0x58] sm:$0xff] 0.0
      %60 = vst [vmem:[#allocation2 + $0x60] sm:$0xff] 0.0
      %61 = vst [vmem:[#allocation2 + $0x68] sm:$0xff] 0.0
      %62 = vst [vmem:[#allocation2 + $0x70] sm:$0xff] 0.0
      %63 = vst [vmem:[#allocation2 + $0x78] sm:$0xff] 0.0
    $region25: #{tpu_custom_call.1} parent=1 // pred_fallthru
      _
    %v64 = vld [vmem:[#allocation2] sm:$0xff]
    %v65 = vld [vmem:[#allocation2 + $0x8] sm:$0xff]
    %v66 = vld [vmem:[#allocation2 + $0x10] sm:$0xff]
    %v67 = vld [vmem:[#allocation2 + $0x18] sm:$0xff]
    %v68 = vld [vmem:[#allocation2 + $0x20] sm:$0xff]
    %v69 = vld [vmem:[#allocation2 + $0x28] sm:$0xff]
    %v70 = vld [vmem:[#allocation2 + $0x30] sm:$0xff]
    %v71 = vld [vmem:[#allocation2 + $0x38] sm:$0xff]
    %v72 = vld [vmem:[#allocation2 + $0x40] sm:$0xff]
    %v73 = vld [vmem:[#allocation2 + $0x48] sm:$0xff]
    %v74 = vld [vmem:[#allocation2 + $0x50] sm:$0xff]
    %v75 = vld [vmem:[#allocation2 + $0x58] sm:$0xff]
    %v76 = vld [vmem:[#allocation2 + $0x60] sm:$0xff]
    %v77 = vld [vmem:[#allocation2 + $0x68] sm:$0xff]
    %v78 = vld [vmem:[#allocation2 + $0x70] sm:$0xff]
    %v79 = vld [vmem:[#allocation2 + $0x78] sm:$0xff]
    %v80 = vld [vmem:[#allocation3] sm:$0xf]
    %v81 = vld [vmem:[#allocation3 + $0x4] sm:$0xf]
    %v82 = vld [vmem:[#allocation3 + $0x8] sm:$0xf]
    %v83 = vld [vmem:[#allocation3 + $0xc] sm:$0xf]
    %v84 = vld [vmem:[#allocation3 + $0x10] sm:$0xf]
    %v85 = vld [vmem:[#allocation3 + $0x14] sm:$0xf]
    %v86 = vld [vmem:[#allocation3 + $0x18] sm:$0xf]
    %v87 = vld [vmem:[#allocation3 + $0x1c] sm:$0xf]
    %v88 = vld [vmem:[#allocation3 + $0x20] sm:$0xf]
    %v89 = vld [vmem:[#allocation3 + $0x24] sm:$0xf]
    %v90 = vld [vmem:[#allocation3 + $0x28] sm:$0xf]
    %v91 = vld [vmem:[#allocation3 + $0x2c] sm:$0xf]
    %v92 = vld [vmem:[#allocation3 + $0x30] sm:$0xf]
    %v93 = vld [vmem:[#allocation3 + $0x34] sm:$0xf]
    %v94 = vld [vmem:[#allocation3 + $0x38] sm:$0xf]
    %v95 = vld [vmem:[#allocation3 + $0x3c] sm:$0xf]
    %v96 = vld [vmem:[#allocation6] sm:$0xf]
    %v97 = vld [vmem:[#allocation6 + $0x4] sm:$0xf]
    %v98 = vld [vmem:[#allocation6 + $0x8] sm:$0xf]
    %v99 = vld [vmem:[#allocation6 + $0xc] sm:$0xf]
    %v100 = vld [vmem:[#allocation6 + $0x10] sm:$0xf]
    %v101 = vld [vmem:[#allocation6 + $0x14] sm:$0xf]
    %v102 = vld [vmem:[#allocation6 + $0x18] sm:$0xf]
    %v103 = vld [vmem:[#allocation6 + $0x1c] sm:$0xf]
    %v104 = vld [vmem:[#allocation6 + $0x20] sm:$0xf]
    %v105 = vld [vmem:[#allocation6 + $0x24] sm:$0xf]
    %v106 = vld [vmem:[#allocation6 + $0x28] sm:$0xf]
    %v107 = vld [vmem:[#allocation6 + $0x2c] sm:$0xf]
    %v108 = vld [vmem:[#allocation6 + $0x30] sm:$0xf]
    %v109 = vld [vmem:[#allocation6 + $0x34] sm:$0xf]
    %v110 = vld [vmem:[#allocation6 + $0x38] sm:$0xf]
    %v111 = vld [vmem:[#allocation6 + $0x3c] sm:$0xf]
    %v128 = vunpack.c.l.b16 %v80
    %v129 = vunpack.c.l.b16 %v81
    %v130 = vunpack.c.l.b16 %v82
    %v131 = vunpack.c.l.b16 %v83
    %v132 = vunpack.c.l.b16 %v84
    %v133 = vunpack.c.l.b16 %v85
    %v134 = vunpack.c.l.b16 %v86
    %v135 = vunpack.c.l.b16 %v87
    %v136 = vunpack.c.l.b16 %v88
    %v137 = vunpack.c.l.b16 %v89
    %v138 = vunpack.c.l.b16 %v90
    %v139 = vunpack.c.l.b16 %v91
    %v140 = vunpack.c.l.b16 %v92
    %v141 = vunpack.c.l.b16 %v93
    %v142 = vunpack.c.l.b16 %v94
    %v143 = vunpack.c.l.b16 %v95
    %v144 = vpack.c.b16 %v129, %v128
    %v145 = vpack.c.b16 %v131, %v130
    %v146 = vpack.c.b16 %v133, %v132
    %v147 = vpack.c.b16 %v135, %v134
    %v148 = vpack.c.b16 %v137, %v136
    %v149 = vpack.c.b16 %v139, %v138
    %v150 = vpack.c.b16 %v141, %v140
    %v151 = vpack.c.b16 %v143, %v142
    %v176 = vunpack.c.l.b16 %v96
    %v177 = vunpack.c.l.b16 %v97
    %v178 = vunpack.c.l.b16 %v98
    %v179 = vunpack.c.l.b16 %v99
    %v180 = vunpack.c.l.b16 %v100
    %v181 = vunpack.c.l.b16 %v101
    %v182 = vunpack.c.l.b16 %v102
    %v183 = vunpack.c.l.b16 %v103
    %v184 = vunpack.c.l.b16 %v104
    %v185 = vunpack.c.l.b16 %v105
    %v186 = vunpack.c.l.b16 %v106
    %v187 = vunpack.c.l.b16 %v107
    %v188 = vunpack.c.l.b16 %v108
    %v189 = vunpack.c.l.b16 %v109
    %v190 = vunpack.c.l.b16 %v110
    %v191 = vunpack.c.l.b16 %v111
    %v192 = vpack.c.b16 %v177, %v176
    %v193 = vpack.c.b16 %v179, %v178
    %v194 = vpack.c.b16 %v181, %v180
    %v195 = vpack.c.b16 %v183, %v182
    %v196 = vpack.c.b16 %v185, %v184
    %v197 = vpack.c.b16 %v187, %v186
    %v198 = vpack.c.b16 %v189, %v188
    %v199 = vpack.c.b16 %v191, %v190
    %208 = vmatprep.subr.bf16.mxu0 0
    %209 = vmatpush1.bf16.msra.mxu0 %v199
    %210 = vmatprep.subr.bf16.mxu0 0
    %211 = vmatpush1.bf16.msra.mxu0 %v198
    %212 = vmatprep.subr.bf16.mxu0 0
    %213 = vmatpush1.bf16.msra.mxu0 %v197
    %214 = vmatprep.subr.bf16.mxu0 0
    %215 = vmatpush1.bf16.msra.mxu0 %v196
    %216 = vmatprep.subr.bf16.mxu0 0
    %217 = vmatpush1.bf16.msra.mxu0 %v195
    %218 = vmatprep.subr.bf16.mxu0 0
    %219 = vmatpush1.bf16.msra.mxu0 %v194
    %220 = vmatprep.subr.bf16.mxu0 0
    %221 = vmatpush1.bf16.msra.mxu0 %v193
    %222 = vmatprep.subr.bf16.mxu0 0
    %223 = vmatpush1.bf16.msra.mxu0 %v192
    %224 = vmatprep.subr.bf16.mxu0 0
    %225 = vmatpush2.bf16.msra.mxu0 0
    %226 = vmatprep.subr.bf16.mxu0 0
    %227 = vmatpush2.bf16.msra.mxu0 0
    %228 = vmatprep.subr.bf16.mxu0 0
    %229 = vmatpush2.bf16.msra.mxu0 0
    %230 = vmatprep.subr.bf16.mxu0 0
    %231 = vmatpush2.bf16.msra.mxu0 0
    %232 = vmatprep.subr.bf16.mxu0 0
    %233 = vmatpush2.bf16.msra.mxu0 0
    %234 = vmatprep.subr.bf16.mxu0 0
    %235 = vmatpush2.bf16.msra.mxu0 0
    %236 = vmatprep.subr.bf16.mxu0 0
    %237 = vmatpush2.bf16.msra.mxu0 0
    %238 = vmatprep.subr.bf16.mxu0 0
    %239 = vmatpush2.bf16.msra.mxu0 0
    %240 = vmatprep.mubr.bf16.mxu0 0
    %241 = vmatmul.mubr.bf16.gmra.mxu0 %v144
    %v242 = vpop.f32.mrf.mxu0
    %v243 = vadd.f32 0.0, %v242
    %v244 = vpop.f32.mrf.mxu0
    %v245 = vpop.f32.mrf.mxu0
    %v246 = vadd.f32 0.0, %v245
    %v247 = vpop.f32.mrf.mxu0
    %248 = vmatprep.mubr.bf16.mxu0 0
    %249 = vmatmul.mubr.bf16.gmra.mxu0 %v145
    %v250 = vpop.f32.mrf.mxu0
    %v251 = vadd.f32 0.0, %v250
    %v252 = vpop.f32.mrf.mxu0
    %v253 = vpop.f32.mrf.mxu0
    %v254 = vadd.f32 0.0, %v253
    %v255 = vpop.f32.mrf.mxu0
    %256 = vmatprep.mubr.bf16.mxu0 0
    %257 = vmatmul.mubr.bf16.gmra.mxu0 %v146
    %v258 = vpop.f32.mrf.mxu0
    %v259 = vadd.f32 0.0, %v258
    %v260 = vpop.f32.mrf.mxu0
    %v261 = vpop.f32.mrf.mxu0
    %v262 = vadd.f32 0.0, %v261
    %v263 = vpop.f32.mrf.mxu0
    %264 = vmatprep.mubr.bf16.mxu0 0
    %265 = vmatmul.mubr.bf16.gmra.mxu0 %v147
    %v266 = vpop.f32.mrf.mxu0
    %v267 = vadd.f32 0.0, %v266
    %v268 = vpop.f32.mrf.mxu0
    %v269 = vpop.f32.mrf.mxu0
    %v270 = vadd.f32 0.0, %v269
    %v271 = vpop.f32.mrf.mxu0
    %272 = vmatprep.mubr.bf16.mxu0 0
    %273 = vmatmul.mubr.bf16.gmra.mxu0 %v148
    %v274 = vpop.f32.mrf.mxu0
    %v275 = vadd.f32 0.0, %v274
    %v276 = vpop.f32.mrf.mxu0
    %v277 = vpop.f32.mrf.mxu0
    %v278 = vadd.f32 0.0, %v277
    %v279 = vpop.f32.mrf.mxu0
    %280 = vmatprep.mubr.bf16.mxu0 0
    %281 = vmatmul.mubr.bf16.gmra.mxu0 %v149
    %v282 = vpop.f32.mrf.mxu0
    %v283 = vadd.f32 0.0, %v282
    %v284 = vpop.f32.mrf.mxu0
    %v285 = vpop.f32.mrf.mxu0
    %v286 = vadd.f32 0.0, %v285
    %v287 = vpop.f32.mrf.mxu0
    %288 = vmatprep.mubr.bf16.mxu0 0
    %289 = vmatmul.mubr.bf16.gmra.mxu0 %v150
    %v290 = vpop.f32.mrf.mxu0
    %v291 = vadd.f32 0.0, %v290
    %v292 = vpop.f32.mrf.mxu0
    %v293 = vpop.f32.mrf.mxu0
    %v294 = vadd.f32 0.0, %v293
    %v295 = vpop.f32.mrf.mxu0
    %296 = vmatprep.mubr.bf16.mxu0 0
    %297 = vmatmul.mubr.bf16.gmra.mxu0 %v151
    %v298 = vpop.f32.mrf.mxu0
    %v299 = vadd.f32 0.0, %v298
    %v300 = vpop.f32.mrf.mxu0
    %v301 = vpop.f32.mrf.mxu0
    %v302 = vadd.f32 0.0, %v301
    %v303 = vpop.f32.mrf.mxu0
    %304 = vdwg.mxu0
    %v305 = vadd.f32 %v64, %v243
    %v306 = vadd.f32 %v65, %v246
    %v307 = vadd.f32 %v66, %v251
    %v308 = vadd.f32 %v67, %v254
    %v309 = vadd.f32 %v68, %v259
    %v310 = vadd.f32 %v69, %v262
    %v311 = vadd.f32 %v70, %v267
    %v312 = vadd.f32 %v71, %v270
    %v313 = vadd.f32 %v72, %v275
    %v314 = vadd.f32 %v73, %v278
    %v315 = vadd.f32 %v74, %v283
    %v316 = vadd.f32 %v75, %v286
    %v317 = vadd.f32 %v76, %v291
    %v318 = vadd.f32 %v77, %v294
    %v319 = vadd.f32 %v78, %v299
    %v320 = vadd.f32 %v79, %v302
    %321 = vst [vmem:[#allocation2] sm:$0xff] %v305
    %322 = vst [vmem:[#allocation2 + $0x8] sm:$0xff] %v306
    %323 = vst [vmem:[#allocation2 + $0x10] sm:$0xff] %v307
    %324 = vst [vmem:[#allocation2 + $0x18] sm:$0xff] %v308
    %325 = vst [vmem:[#allocation2 + $0x20] sm:$0xff] %v309
    %326 = vst [vmem:[#allocation2 + $0x28] sm:$0xff] %v310
    %327 = vst [vmem:[#allocation2 + $0x30] sm:$0xff] %v311
    %328 = vst [vmem:[#allocation2 + $0x38] sm:$0xff] %v312
    %329 = vst [vmem:[#allocation2 + $0x40] sm:$0xff] %v313
    %330 = vst [vmem:[#allocation2 + $0x48] sm:$0xff] %v314
    %331 = vst [vmem:[#allocation2 + $0x50] sm:$0xff] %v315
    %332 = vst [vmem:[#allocation2 + $0x58] sm:$0xff] %v316
    %333 = vst [vmem:[#allocation2 + $0x60] sm:$0xff] %v317
    %334 = vst [vmem:[#allocation2 + $0x68] sm:$0xff] %v318
    %335 = vst [vmem:[#allocation2 + $0x70] sm:$0xff] %v319
    %336 = vst [vmem:[#allocation2 + $0x78] sm:$0xff] %v320
    // Predicated region
    $region26: #{tpu_custom_call.1} parent=1 // pred_check
      %p337 = pneg %p44
    $region27: #{tpu_custom_call.1} parent=1 // pred_check_branch
      %339 = sbr.rel (%p337) target = $region29
    $region28: #{tpu_custom_call.1} parent=1 // pred_region
      %v340 = vld [vmem:[#allocation2] sm:$0xff]
      %v341 = vld [vmem:[#allocation2 + $0x8] sm:$0xff]
      %v342 = vld [vmem:[#allocation2 + $0x10] sm:$0xff]
      %v343 = vld [vmem:[#allocation2 + $0x18] sm:$0xff]
      %v344 = vld [vmem:[#allocation2 + $0x20] sm:$0xff]
      %v345 = vld [vmem:[#allocation2 + $0x28] sm:$0xff]
      %v346 = vld [vmem:[#allocation2 + $0x30] sm:$0xff]
      %v347 = vld [vmem:[#allocation2 + $0x38] sm:$0xff]
      %v348 = vld [vmem:[#allocation2 + $0x40] sm:$0xff]
      %v349 = vld [vmem:[#allocation2 + $0x48] sm:$0xff]
      %v350 = vld [vmem:[#allocation2 + $0x50] sm:$0xff]
      %v351 = vld [vmem:[#allocation2 + $0x58] sm:$0xff]
      %v352 = vld [vmem:[#allocation2 + $0x60] sm:$0xff]
      %v353 = vld [vmem:[#allocation2 + $0x68] sm:$0xff]
      %v354 = vld [vmem:[#allocation2 + $0x70] sm:$0xff]
      %v355 = vld [vmem:[#allocation2 + $0x78] sm:$0xff]
      %v356 = vld [vmem:[%s2] sm:$0x1]
      %v358 = vlaneseq
      %v359 = vshrl.u32 %v358, 7
      %v360 = vsub.s32 0, %v359
      %v361 = vrot.slane %v356, %v360
      %v363 = vadd.f32 %v340, %v361
      %v364 = vadd.f32 %v341, %v361
      %v365 = vadd.f32 %v342, %v361
      %v366 = vadd.f32 %v343, %v361
      %v367 = vadd.f32 %v344, %v361
      %v368 = vadd.f32 %v345, %v361
      %v369 = vadd.f32 %v346, %v361
      %v370 = vadd.f32 %v347, %v361
      %v371 = vadd.f32 %v348, %v361
      %v372 = vadd.f32 %v349, %v361
      %v373 = vadd.f32 %v350, %v361
      %v374 = vadd.f32 %v351, %v361
      %v375 = vadd.f32 %v352, %v361
      %v376 = vadd.f32 %v353, %v361
      %v377 = vadd.f32 %v354, %v361
      %v378 = vadd.f32 %v355, %v361
      %379 = vst [vmem:[#allocation8] sm:$0xff] %v363
      %380 = vst [vmem:[#allocation8 + $0x8] sm:$0xff] %v364
      %381 = vst [vmem:[#allocation8 + $0x10] sm:$0xff] %v365
      %382 = vst [vmem:[#allocation8 + $0x18] sm:$0xff] %v366
      %383 = vst [vmem:[#allocation8 + $0x20] sm:$0xff] %v367
      %384 = vst [vmem:[#allocation8 + $0x28] sm:$0xff] %v368
      %385 = vst [vmem:[#allocation8 + $0x30] sm:$0xff] %v369
      %386 = vst [vmem:[#allocation8 + $0x38] sm:$0xff] %v370
      %387 = vst [vmem:[#allocation8 + $0x40] sm:$0xff] %v371
      %388 = vst [vmem:[#allocation8 + $0x48] sm:$0xff] %v372
      %389 = vst [vmem:[#allocation8 + $0x50] sm:$0xff] %v373
      %390 = vst [vmem:[#allocation8 + $0x58] sm:$0xff] %v374
      %391 = vst [vmem:[#allocation8 + $0x60] sm:$0xff] %v375
      %392 = vst [vmem:[#allocation8 + $0x68] sm:$0xff] %v376
      %393 = vst [vmem:[#allocation8 + $0x70] sm:$0xff] %v377
      %394 = vst [vmem:[#allocation8 + $0x78] sm:$0xff] %v378
    $region29: #{tpu_custom_call.1} parent=1 // pred_fallthru
      _
    // Predicated region
    $region30: #{tpu_custom_call.1} parent=1 // pred_check
      _
    $region31: #{tpu_custom_call.1} parent=1 // pred_check_branch
      %396 = sbr.rel (0) target = $region33
    $region32: #{tpu_custom_call.1} parent=1 // pred_region
      %s398 = ssub.s32 2048, 2048
      %399 = vsyncadd [#allocation5], %s398
      %s400 = sshll.u32 [#allocation8], 4
      %s401 = int_to_ptr.vmem [resolvable:$true] %s400
      %406 = dma.vmem_to_hbm [thread:$0]  %s401, 2048, %s3, [#allocation5], 128, 128, 8
    $region33: #{tpu_custom_call.1} parent=1 // pred_fallthru
      _
    // Predicated region
    $region34: #{tpu_custom_call.1} parent=1 // pred_check
      _
    $region35: #{tpu_custom_call.1} parent=1 // pred_check_branch
      %408 = sbr.rel (0) target = $region37
    $region36: #{tpu_custom_call.1} parent=1 // pred_region
      %409 = dma.done [#allocation5], 2048
    $region37: #{tpu_custom_call.1} parent=1 // pred_fallthru
      _
    %410 = vsyncpa [#allocation4], 1
    %411 = vsyncpa [#allocation7], 1
    %412 = vsyncpa [#allocation5], 1

</llo_original>
